<compile_context>
chip_gen: v7x
topology: tpu7x:2x2x1
jax: 0.10.0
libtpu: 0.0.40
codegen_flags: <defaults>
</compile_context>

<pallas_src>
import functools

import jax
import jax.numpy as jnp
from jax.experimental import pallas as pl
from jax.experimental.pallas import tpu as pltpu

_LANE = 128
_SUBLANE = 8


def _round_up(x: int, m: int) -> int:
    return ((x + m - 1) // m) * m


def _kd_classification_kernel(ys_ref, yt_ref, out_ref, *, inv_t, tb, b_actual):
    i = pl.program_id(0)
    s = ys_ref[...].astype(jnp.float32)            # (TB, C)
    t = yt_ref[...].astype(jnp.float32)            # (TB, C)

    # log_softmax(y_s / T): row max on raw logits, 1/T folded into one multiply.
    s_shift = (s - jnp.max(s, axis=-1, keepdims=True)) * inv_t
    log_z = jnp.log(jnp.sum(jnp.exp(s_shift), axis=-1, keepdims=True))   # (TB,1)

    # softmax(y_t / T), normalization fused into the final per-row reduction:
    #   -sum(p_t * (s_shift - log_z)) = log_z - sum(t_exp*s_shift)/sum(t_exp)
    t_shift = (t - jnp.max(t, axis=-1, keepdims=True)) * inv_t
    t_exp = jnp.exp(t_shift)
    dot_ts = jnp.sum(t_exp * s_shift, axis=-1, keepdims=True)            # (TB,1)
    denom = jnp.sum(t_exp, axis=-1, keepdims=True)                       # (TB,1)
    per_row = log_z - dot_ts / denom                                     # exact

    # Mask rows beyond the true batch (last grid block may be partial; any
    # garbage/NaN in those rows is discarded by the select).
    row_idx = i * tb + jax.lax.broadcasted_iota(jnp.int32, (tb, 1), 0)
    per_row = jnp.where(row_idx < b_actual, per_row, 0.0)

    # One partial sum per grid step -> this step's own output block (keeps the
    # batch grid axis fully "parallel": no shared accumulator).
    out_ref[...] = jnp.broadcast_to(jnp.sum(per_row), out_ref.shape)


def _kd_regression_kernel(ys_ref, yt_ref, out_ref, *, inv_t2, tb, b_actual):
    i = pl.program_id(0)
    d = ys_ref[...].astype(jnp.float32) - yt_ref[...].astype(jnp.float32)
    row_sum = jnp.sum(d * d, axis=-1, keepdims=True)                     # (TB,1)
    # Mask rows beyond the true batch (no wrapper padding anymore).
    row_idx = i * tb + jax.lax.broadcasted_iota(jnp.int32, (tb, 1), 0)
    row_sum = jnp.where(row_idx < b_actual, row_sum, 0.0)
    out_ref[...] = jnp.broadcast_to(jnp.sum(row_sum) * inv_t2, out_ref.shape)


def _vmem_capacity_bytes() -> int:
    try:
        return int(pltpu.get_tpu_info().vmem_capacity_bytes)
    except Exception:
        return 64 * 1024 * 1024  # conservative fallback (v7x-sized)


def distill_kl(y_s: jax.Array, y_t: jax.Array, T: float,
               mode: str = "classification", *,
               max_rows_per_tile: int = 2048) -> jax.Array:
    """Pallas implementation of DistillKL.forward. Returns a scalar f32 loss."""
    assert y_s.shape == y_t.shape
    c = y_s.shape[-1]
    y_s2 = y_s.reshape(-1, c)
    y_t2 = y_t.reshape(-1, c)
    b = y_s2.shape[0]

    itemsize = jnp.dtype(y_s2.dtype).itemsize
    # Packed-sublane count for the input dtype (8 f32, 16 bf16, 32 int8/fp8).
    sublane_pack = max(_SUBLANE, 32 // max(1, itemsize))

    # Row tile sizing: VMEM-resident bytes per row =
    #   2 inputs x 2 pipeline buffers (native dtype) + ~6 live f32 temporaries,
    # all on the lane-padded class width.  Budget derived from the chip's VMEM
    # (128 MiB v5e/v6e, 64 MiB v7x) with headroom.
    c_eff = _round_up(c, _LANE)
    per_row_bytes = 2 * 2 * c_eff * itemsize + 6 * c_eff * 4
    vmem_cap = _vmem_capacity_bytes()
    vmem_budget = (vmem_cap * 3) // 8                       # 48 MiB / 24 MiB
    vmem_limit = min((vmem_cap * 3) // 4, 100 * 1024 * 1024)

    tb = (vmem_budget // per_row_bytes) // sublane_pack * sublane_pack
    tb = max(sublane_pack, min(max_rows_per_tile, tb))
    tb = min(tb, _round_up(b, sublane_pack))
    num_tiles = pl.cdiv(b, tb)

    if mode == "regression":
        kernel = functools.partial(_kd_regression_kernel,
                                   inv_t2=1.0 / (float(T) ** 2),
                                   tb=tb, b_actual=b)
        divisor = float(b * c)
        flops, transc = 3 * b * c, 0
    else:
        kernel = functools.partial(_kd_classification_kernel,
                                   inv_t=1.0 / float(T), tb=tb, b_actual=b)
        divisor = float(b)
        flops, transc = 8 * b * c, 2 * b * c

    partials = pl.pallas_call(
        kernel,
        out_shape=jax.ShapeDtypeStruct((num_tiles, _SUBLANE, _LANE), jnp.float32),
        grid=(num_tiles,),
        in_specs=[
            # Last dim == full C (no lane padding needed by the wrapper);
            # second-last dim tb is a multiple of 8.  Last batch block may be
            # partial -- rows beyond b are masked inside the kernel.
            pl.BlockSpec((tb, c), lambda i: (i, 0)),
            pl.BlockSpec((tb, c), lambda i: (i, 0)),
        ],
        out_specs=pl.BlockSpec((1, _SUBLANE, _LANE), lambda i: (i, 0, 0)),
        compiler_params=pltpu.CompilerParams(
            dimension_semantics=("parallel",),
            vmem_limit_bytes=int(vmem_limit),
        ),
        cost_estimate=pl.CostEstimate(
            flops=flops,
            transcendentals=transc,
            bytes_accessed=2 * b * c * itemsize
            + num_tiles * _SUBLANE * _LANE * 4,
        ),
    )(y_s2, y_t2)

    # Final (tiny) reduction over per-tile partials in the wrapper.
    return jnp.sum(partials[:, 0, 0]) / divisor


def _reference(y_s, y_t, T, mode="classification"):
    # Pure-JAX reference mirroring the PyTorch module.
    y_s = y_s.astype(jnp.float32)
    y_t = y_t.astype(jnp.float32)
    if mode == "regression":
        return jnp.mean(((y_s / T) - (y_t / T)) ** 2)
    p_s = jax.nn.log_softmax(y_s / T, axis=-1)
    p_t = jax.nn.softmax(y_t / T, axis=-1)
    return jnp.mean(-jnp.sum(p_t * p_s, axis=-1))


if __name__ == "__main__":
    T = 4.0
    key = jax.random.PRNGKey(0)
    k1, k2, k3, k4, k5, k6 = jax.random.split(key, 6)

    # Small demo shape: batch=8, classes=32 (narrow class axis = full-dim block).
    y_s = jax.random.normal(k1, (8, 32), dtype=jnp.float32)
    y_t = jax.random.normal(k2, (8, 32), dtype=jnp.float32)

    loss_cls = distill_kl(y_s, y_t, T, mode="classification")
    jax.block_until_ready(loss_cls)
    ref_cls = _reference(y_s, y_t, T, mode="classification")
    assert jnp.allclose(loss_cls, ref_cls, atol=1e-4, rtol=1e-4), (loss_cls, ref_cls)

    loss_reg = distill_kl(y_s, y_t, T, mode="regression")
    jax.block_until_ready(loss_reg)
    ref_reg = _reference(y_s, y_t, T, mode="regression")
    assert jnp.allclose(loss_reg, ref_reg, atol=1e-5, rtol=1e-5), (loss_reg, ref_reg)

    # Ragged shape exercising non-128-multiple C (full-dim block), a partial
    # last batch block (20 rows -> 3 row tiles of 8), and a multi-tile grid.
    y_s2 = jax.random.normal(k3, (20, 200), dtype=jnp.float32)
    y_t2 = jax.random.normal(k4, (20, 200), dtype=jnp.float32)

    loss2 = distill_kl(y_s2, y_t2, T, mode="classification", max_rows_per_tile=8)
    jax.block_until_ready(loss2)
    ref2 = _reference(y_s2, y_t2, T, mode="classification")
    assert jnp.allclose(loss2, ref2, atol=1e-4, rtol=1e-4), (loss2, ref2)

    loss2r = distill_kl(y_s2, y_t2, T, mode="regression", max_rows_per_tile=8)
    jax.block_until_ready(loss2r)
    ref2r = _reference(y_s2, y_t2, T, mode="regression")
    assert jnp.allclose(loss2r, ref2r, atol=1e-5, rtol=1e-5), (loss2r, ref2r)

    # Native-dtype path: bf16 logits stay bf16 through pallas_call (half the
    # HBM bytes); comparison against the f32 reference on the same bf16 inputs.
    y_s3 = jax.random.normal(k5, (16, 160), dtype=jnp.bfloat16)
    y_t3 = jax.random.normal(k6, (16, 160), dtype=jnp.bfloat16)

    loss3 = distill_kl(y_s3, y_t3, T, mode="classification")
    jax.block_until_ready(loss3)
    ref3 = _reference(y_s3, y_t3, T, mode="classification")
    assert jnp.allclose(loss3, ref3, atol=2e-3, rtol=2e-3), (loss3, ref3)

    print("KERNEL_OK")
</pallas_src>

<mosaic_0001>
module attributes {stable_mosaic.version = 11 : i64} {
  func.func @_kd_classification_kernel(%arg0: i32, %arg1: memref<8x32xf32, #tpu.memory_space<vmem>>, %arg2: memref<8x32xf32, #tpu.memory_space<vmem>>, %arg3: memref<1x8x128xf32, #tpu.memory_space<vmem>>) attributes {dimension_semantics = [#tpu.dimension_semantics<parallel>], iteration_bounds = array<i64: 1>, scalar_prefetch = 0 : i64, scratch_operands = 0 : i64, tpu.core_type = #tpu.core_type<tc>, window_params = [{transform_indices = @transform_0, window_bounds = array<i64: 8, 32>}, {transform_indices = @transform_1, window_bounds = array<i64: 8, 32>}, {transform_indices = @transform_2, window_bounds = array<i64: 1, 8, 128>}]} {
    %c0 = arith.constant 0 : index
    %c0_0 = arith.constant 0 : index
    %0 = vector.load %arg1[%c0, %c0_0] : memref<8x32xf32, #tpu.memory_space<vmem>>, vector<8x32xf32>
    %c0_1 = arith.constant 0 : index
    %c0_2 = arith.constant 0 : index
    %1 = vector.load %arg2[%c0_1, %c0_2] : memref<8x32xf32, #tpu.memory_space<vmem>>, vector<8x32xf32>
    %cst = arith.constant dense<0xFF800000> : vector<8xf32>
    %2 = vector.multi_reduction <maximumf>, %0, %cst [1] : vector<8x32xf32> to vector<8xf32>
    %3 = vector.shape_cast %2 : vector<8xf32> to vector<8x1xf32>
    %4 = vector.broadcast %3 : vector<8x1xf32> to vector<8x32xf32>
    %5 = arith.subf %0, %4 : vector<8x32xf32>
    %cst_3 = arith.constant 2.500000e-01 : f32
    %6 = vector.broadcast %cst_3 : f32 to vector<8x32xf32>
    %7 = arith.mulf %5, %6 : vector<8x32xf32>
    %8 = math.exp %7 : vector<8x32xf32>
    %cst_4 = arith.constant dense<0.000000e+00> : vector<8xf32>
    %9 = vector.multi_reduction <add>, %8, %cst_4 [1] : vector<8x32xf32> to vector<8xf32>
    %10 = vector.shape_cast %9 : vector<8xf32> to vector<8x1xf32>
    %11 = math.log %10 : vector<8x1xf32>
    %cst_5 = arith.constant dense<0xFF800000> : vector<8xf32>
    %12 = vector.multi_reduction <maximumf>, %1, %cst_5 [1] : vector<8x32xf32> to vector<8xf32>
    %13 = vector.shape_cast %12 : vector<8xf32> to vector<8x1xf32>
    %14 = vector.broadcast %13 : vector<8x1xf32> to vector<8x32xf32>
    %15 = arith.subf %1, %14 : vector<8x32xf32>
    %cst_6 = arith.constant 2.500000e-01 : f32
    %16 = vector.broadcast %cst_6 : f32 to vector<8x32xf32>
    %17 = arith.mulf %15, %16 : vector<8x32xf32>
    %18 = math.exp %17 : vector<8x32xf32>
    %19 = arith.mulf %18, %7 : vector<8x32xf32>
    %cst_7 = arith.constant dense<0.000000e+00> : vector<8xf32>
    %20 = vector.multi_reduction <add>, %19, %cst_7 [1] : vector<8x32xf32> to vector<8xf32>
    %21 = vector.shape_cast %20 : vector<8xf32> to vector<8x1xf32>
    %cst_8 = arith.constant dense<0.000000e+00> : vector<8xf32>
    %22 = vector.multi_reduction <add>, %18, %cst_8 [1] : vector<8x32xf32> to vector<8xf32>
    %23 = vector.shape_cast %22 : vector<8xf32> to vector<8x1xf32>
    %24 = arith.divf %21, %23 : vector<8x1xf32>
    %25 = arith.subf %11, %24 : vector<8x1xf32>
    %c8_i32 = arith.constant 8 : i32
    %26 = arith.muli %arg0, %c8_i32 : i32
    %27 = tpu.iota {dimensions = array<i32: 0>} : vector<8x1xi32>
    %28 = vector.broadcast %26 : i32 to vector<8x1xi32>
    %29 = arith.addi %28, %27 : vector<8x1xi32>
    %c8_i32_9 = arith.constant 8 : i32
    %30 = vector.broadcast %c8_i32_9 : i32 to vector<8x1xi32>
    %31 = arith.cmpi slt, %29, %30 : vector<8x1xi32>
    %cst_10 = arith.constant 0.000000e+00 : f32
    %32 = vector.broadcast %cst_10 : f32 to vector<8x1xf32>
    %33 = arith.select %31, %25, %32 : vector<8x1xi1>, vector<8x1xf32>
    %34 = vector.shape_cast %33 : vector<8x1xf32> to vector<1x8x1xf32>
    %cst_11 = arith.constant dense<0.000000e+00> : vector<1xf32>
    %35 = vector.multi_reduction <add>, %34, %cst_11 [1, 2] : vector<1x8x1xf32> to vector<1xf32>
    %36 = vector.shape_cast %35 : vector<1xf32> to vector<1x1x1xf32>
    %37 = vector.extract %36[0, 0, 0] : f32 from vector<1x1x1xf32>
    %38 = vector.broadcast %37 : f32 to vector<1x8x128xf32>
    %c0_12 = arith.constant 0 : index
    %c0_13 = arith.constant 0 : index
    %c0_14 = arith.constant 0 : index
    %39 = vector.load %arg3[%c0_12, %c0_13, %c0_14] : memref<1x8x128xf32, #tpu.memory_space<vmem>>, vector<1x8x128xf32>
    tpu.vector_store %arg3[%c0_12, %c0_13, %c0_14], %38 {strides = array<i32>} : memref<1x8x128xf32, #tpu.memory_space<vmem>>, vector<1x8x128xf32>,
    return
  }
  func.func @transform_0(%arg0: i32) -> (i32, i32) {
    %c0_i32 = arith.constant 0 : i32
    %c0_i32_0 = arith.constant 0 : i32
    return %arg0, %c0_i32 : i32, i32
  }
  func.func @transform_1(%arg0: i32) -> (i32, i32) {
    %c0_i32 = arith.constant 0 : i32
    %c0_i32_0 = arith.constant 0 : i32
    return %arg0, %c0_i32 : i32, i32
  }
  func.func @transform_2(%arg0: i32) -> (i32, i32, i32) {
    %c0_i32 = arith.constant 0 : i32
    %c0_i32_0 = arith.constant 0 : i32
    %c0_i32_1 = arith.constant 0 : i32
    return %arg0, %c0_i32, %c0_i32_0 : i32, i32, i32
  }
}

</mosaic_0001>

<llo_original>
// kernel: tpu_custom_call.1
$region0: #{tpu_custom_call.1}
  #allocation0 [shape = 'u32[]', space=smem, size = 0x4, offset = 0x4, fixed_abs, tag = 'smem constant byte address 0x4 - core index']
  #allocation1 [shape = 'u32[144,128]{1,0:T(1,128)}', space=vmem, size = 0x12000, scoped, tag = 'internal scratch']
  %s0 = inlined_call_operand.hbm [shape: f32[8,32], index: 0, kind: input, shape index: {}]
  %s1 = inlined_call_operand.hbm [shape: f32[8,32], index: 1, kind: input, shape index: {}]
  %s2 = inlined_call_operand.hbm [shape: f32[1,8,128], index: 2, kind: output, shape index: {}]
  %s3 = sld [smem:[#allocation0]]
  $region26: #{tpu_custom_call.1} parent=0
    _
  %s5 = ssub.s32 1, %s3
  %s6 = scalar_select 0, %s5, %s3
  $region1: #{tpu_custom_call.1} parent=0
    #allocation2 [shape = 'u8[4096]{0}', space=vmem, size = 0x1000, scoped, tag = 'input window, operand 0, single buffered']
    #allocation3 [shape = 's32[1]{0}', space=sflag, size = 0x4, scoped, tag = 'scoped memory for tpu_custom_call.1']
    #allocation4 [shape = 's32[1]{0}', space=sflag, size = 0x4, scoped, tag = 'scoped memory for tpu_custom_call.1']
    #allocation5 [shape = 'u8[4096]{0}', space=vmem, size = 0x1000, scoped, tag = 'input window, operand 1, single buffered']
    #allocation6 [shape = 's32[1]{0}', space=sflag, size = 0x4, scoped, tag = 'scoped memory for tpu_custom_call.1']
    #allocation7 [shape = 'u8[4096]{0}', space=vmem, size = 0x1000, scoped, tag = 'output window, operand 0, single buffered']
    %7 = vsyncpa [#allocation3], 0
    %8 = vsyncpa [#allocation6], 0
    %9 = vsyncpa [#allocation4], 0
    // Predicated region
    $region2: #{tpu_custom_call.1} parent=1 // pred_check
      _
    $region3: #{tpu_custom_call.1} parent=1 // pred_check_branch
      %11 = sbr.rel (0) target = $region5
    $region4: #{tpu_custom_call.1} parent=1 // pred_region
      %s13 = ssub.s32 128, 128
      %14 = vsyncadd [#allocation3], %s13
      %s16 = sshll.u32 [#allocation2], 4
      %s17 = int_to_ptr.vmem [resolvable:$true] %s16
      %19 = dma.hbm_to_vmem [thread:$0]  %s0, 128, %s17, [#allocation3]
    $region5: #{tpu_custom_call.1} parent=1 // pred_fallthru
      _
    // Predicated region
    $region6: #{tpu_custom_call.1} parent=1 // pred_check
      _
    $region7: #{tpu_custom_call.1} parent=1 // pred_check_branch
      %21 = sbr.rel (0) target = $region9
    $region8: #{tpu_custom_call.1} parent=1 // pred_region
      %s23 = ssub.s32 128, 128
      %24 = vsyncadd [#allocation6], %s23
      %s26 = sshll.u32 [#allocation5], 4
      %s27 = int_to_ptr.vmem [resolvable:$true] %s26
      %29 = dma.hbm_to_vmem [thread:$0]  %s1, 128, %s27, [#allocation6]
    $region9: #{tpu_custom_call.1} parent=1 // pred_fallthru
      _
    // Predicated region
    $region10: #{tpu_custom_call.1} parent=1 // pred_check
      _
    $region11: #{tpu_custom_call.1} parent=1 // pred_check_branch
      %31 = sbr.rel (0) target = $region13
    $region12: #{tpu_custom_call.1} parent=1 // pred_region
      %32 = dma.done [#allocation3], 128
    $region13: #{tpu_custom_call.1} parent=1 // pred_fallthru
      _
    // Predicated region
    $region14: #{tpu_custom_call.1} parent=1 // pred_check
      _
    $region15: #{tpu_custom_call.1} parent=1 // pred_check_branch
      %34 = sbr.rel (0) target = $region17
    $region16: #{tpu_custom_call.1} parent=1 // pred_region
      %35 = dma.done [#allocation6], 128
    $region17: #{tpu_custom_call.1} parent=1 // pred_fallthru
      _
    %v36 = vld [vmem:[#allocation2] sm:$0xff]
    %v37 = vld [vmem:[#allocation5] sm:$0xff]
    %vm38 = vcmask 261120
    %v39 = vsel %vm38, %v36, -inf
    %40 = vmax.xlane.f32.xlu0 %v39
    %v41 = vpop.xlane.xlu0 %40
    %v42 = vsub.f32 %v36, %v41
    %v43 = vmul.f32 %v42, 0.25
    %v44 = vmul.f32 %v43, 1.442695
    %v45 = vpow.pop %v44
    %v46 = vsel %vm38, %v45, 0.0
    %47 = vadd.xlane.f32.xlu0 %v46
    %v48 = vpop.xlane.xlu0 %47
    %v49 = vlog2.pop %v48
    %v50 = vmul.f32 %v49, 0.6931472
    %v51 = vsel %vm38, %v37, -inf
    %52 = vmax.xlane.f32.xlu0 %v51
    %v53 = vpop.xlane.xlu0 %52
    %v54 = vsub.f32 %v37, %v53
    %v55 = vmul.f32 %v54, 0.25
    %v56 = vmul.f32 %v55, 1.442695
    %v57 = vpow.pop %v56
    %v58 = vmul.f32 %v57, %v43
    %v59 = vsel %vm38, %v58, 0.0
    %60 = vadd.xlane.f32.xlu0 %v59
    %v61 = vpop.xlane.xlu0 %60
    %v62 = vsel %vm38, %v57, 0.0
    %63 = vadd.xlane.f32.xlu0 %v62
    %v64 = vpop.xlane.xlu0 %63
    %v65 = vrcp.pop %v64
    %v66 = vmul.f32 %v61, %v65
    %v67 = vsub.f32 %v50, %v66
    %s68 = smul.u32 0, 8
    %v69 = vlaneseq
    %v70 = vshrl.u32 %v69, 7
    %v71 = vstv %s68
    %v72 = vadd.s32 %v71, %v70
    %vm73 = vcmp.lt.s32.totalorder %v72, 8
    %v74 = vsel %vm73, %v67, 0.0
    %vm75 = vcmask 7168
    %v76 = vsel %vm75, %v74, 0.0
    %77 = vadd.xlane.f32.xlu0 %v76
    %v78 = vpop.xlane.xlu0 %77
    %v79 = vrot.slane %v78, 4
    %v80 = vadd.f32 %v78, %v79
    %v81 = vrot.slane %v80, 2
    %v82 = vadd.f32 %v80, %v81
    %v83 = vrot.slane %v82, 1
    %v84 = vadd.f32 %v82, %v83
    %s85 = vtos %v84
    %v86 = vstv %s85
    %87 = vst [vmem:[#allocation7] sm:$0xff] %v86
    // Predicated region
    $region18: #{tpu_custom_call.1} parent=1 // pred_check
      _
    $region19: #{tpu_custom_call.1} parent=1 // pred_check_branch
      %89 = sbr.rel (0) target = $region21
    $region20: #{tpu_custom_call.1} parent=1 // pred_region
      %s91 = ssub.s32 128, 128
      %92 = vsyncadd [#allocation4], %s91
      %s94 = sshll.u32 [#allocation7], 4
      %s95 = int_to_ptr.vmem [resolvable:$true] %s94
      %97 = dma.vmem_to_hbm [thread:$0]  %s95, 128, %s2, [#allocation4]
    $region21: #{tpu_custom_call.1} parent=1 // pred_fallthru
      _
    // Predicated region
    $region22: #{tpu_custom_call.1} parent=1 // pred_check
      _
    $region23: #{tpu_custom_call.1} parent=1 // pred_check_branch
      %99 = sbr.rel (0) target = $region25
    $region24: #{tpu_custom_call.1} parent=1 // pred_region
      %100 = dma.done [#allocation4], 128
    $region25: #{tpu_custom_call.1} parent=1 // pred_fallthru
      _
    %101 = vsyncpa [#allocation3], 1
    %102 = vsyncpa [#allocation6], 1
    %103 = vsyncpa [#allocation4], 1

</llo_original>
